<compile_context>
chip_gen: v6e
topology: v6e:2x2x1
jax: 0.10.0
libtpu: 0.0.40
codegen_flags: <defaults>
</compile_context>

<pallas_src>
import functools

import jax
import jax.numpy as jnp
from jax import lax
from jax.experimental import pallas as pl
from jax.experimental.pallas import tpu as pltpu

LANES = 128


# ---------------------------------------------------------------------------
# Pallas kernel: 4 quadrant GEMMs (im2col) + fused 2x2 max-pool + BN/bias + ReLU
# ---------------------------------------------------------------------------
def _encoder_block_kernel(lhs_ref, w_ref, scale_ref, shift_ref, o_ref, *, Mp):
    # lhs_ref:   (4*Mp, Kpad)  bf16  im2col patches, rows grouped by 2x2-pool-window position
    # w_ref:     (Kpad, Cpad)  bf16  conv weights (unscaled), (ky,kx,ci) along Kpad
    # scale_ref: (1, Cpad)     f32   gamma / sqrt(var + eps)          (zero-padded)
    # shift_ref: (1, Cpad)     f32   (bias - running_mean)*scale + beta (zero-padded)
    # o_ref:     (Mp, Cpad)    f32   pooled output, rows ordered (n, pooled_y, pooled_x)
    w = w_ref[...]
    scale = scale_ref[...]

    pooled = None
    for g in range(4):  # static unroll over the 4 positions of the 2x2 pool window
        # Tile-aligned row-block slice of the ref (Mp % 8 == 0): direct load, no relayout.
        yg = jnp.dot(lhs_ref[g * Mp:(g + 1) * Mp, :], w,
                     preferred_element_type=jnp.float32) * scale     # BN scale pre-pool (may be <0)
        pooled = yg if pooled is None else jnp.maximum(pooled, yg)

    # dropout: identity (eval mode). Bias/BN shift + ReLU commute with max -> applied once here.
    o_ref[...] = jnp.maximum(pooled + shift_ref[...], 0.0)


def encoder_block_forward(x_nchw, conv_w, conv_b, bn_gamma, bn_beta, bn_mean, bn_var,
                          *, stride=1, padding=1, eps=1e-5):
    """Forward pass of EncoderBlock (norm=True, act=ReLU, pool=MaxPool2d(2,2), eval mode)."""
    N, Cin, H, W = x_nchw.shape
    Cout, _, K, _ = conv_w.shape
    assert stride == 1, "this synthetic kernel instantiates stride=1"
    OH = H + 2 * padding - K + 1
    OW = W + 2 * padding - K + 1
    assert OH % 2 == 0 and OW % 2 == 0
    POH, POW = OH // 2, OW // 2
    Mp = N * POH * POW                      # rows per pool-window quadrant (= pooled pixels)
    assert Mp % 8 == 0                      # keeps the in-kernel row-block slices tile-aligned
    KKC = K * K * Cin
    Kpad = max(LANES, ((KKC + LANES - 1) // LANES) * LANES)
    # NOTE(v6e/v7x): for large Cout pad to multiples of 256 (MXU width); 128 is the lane floor.
    Cpad = ((Cout + LANES - 1) // LANES) * LANES

    # ---- wrapper glue (fine at this toy size): NCHW -> padded NHWC -> lane-dense bf16 im2col ----
    x_nhwc = jnp.transpose(x_nchw, (0, 2, 3, 1))
    xp = jnp.pad(x_nhwc, ((0, 0), (padding, padding), (padding, padding), (0, 0)))
    cols = [xp[:, ky:ky + OH, kx:kx + OW, :] for ky in range(K) for kx in range(K)]
    patches = jnp.concatenate(cols, axis=-1)                         # (N, OH, OW, K*K*Cin)
    # Reorder rows so the 4 positions of every 2x2 pool window form 4 contiguous row groups.
    patches = patches.reshape(N, POH, 2, POW, 2, KKC)                # oy=(py,dy), ox=(px,dx)
    patches = jnp.transpose(patches, (2, 4, 0, 1, 3, 5))             # (dy, dx, N, POH, POW, KKC)
    lhs = patches.reshape(4 * Mp, KKC)
    lhs = jnp.pad(lhs, ((0, 0), (0, Kpad - KKC))).astype(jnp.bfloat16)

    # ---- weights: (co, ci, ky, kx) -> (ky, kx, ci, co) -> (KKC, Cout); unscaled bf16 ----
    w2d = jnp.transpose(conv_w, (2, 3, 1, 0)).reshape(KKC, Cout).astype(jnp.bfloat16)
    w_pad = jnp.zeros((Kpad, Cpad), jnp.bfloat16).at[:KKC, :Cout].set(w2d)

    # ---- BN handled in the f32 epilogue: y = conv*scale + shift ----
    scale = (bn_gamma / jnp.sqrt(bn_var + eps)).astype(jnp.float32)            # (Cout,)
    shift = ((conv_b - bn_mean) * scale + bn_beta).astype(jnp.float32)         # (Cout,)
    scale_pad = jnp.zeros((1, Cpad), jnp.float32).at[0, :Cout].set(scale)
    shift_pad = jnp.zeros((1, Cpad), jnp.float32).at[0, :Cout].set(shift)

    kernel = functools.partial(_encoder_block_kernel, Mp=Mp)

    # Gridless single block: every operand lives wholly in VMEM (~250 KB, far under even v7x's
    # 64 MiB). At larger shapes, add a leading "parallel" spatial-tile grid axis here.
    out = pl.pallas_call(
        kernel,
        out_shape=jax.ShapeDtypeStruct((Mp, Cpad), jnp.float32),
        in_specs=[pl.BlockSpec(memory_space=pltpu.MemorySpace.VMEM)] * 4,
        out_specs=pl.BlockSpec(memory_space=pltpu.MemorySpace.VMEM),
    )(lhs, w_pad, scale_pad, shift_pad)

    # ---- wrapper glue: un-pad channels, back to NCHW ----
    out = out[:, :Cout].reshape(N, POH, POW, Cout)
    return jnp.transpose(out, (0, 3, 1, 2)).astype(jnp.float32)


# ---------------------------------------------------------------------------
# Pure-JAX reference (mirrors the PyTorch eval-mode forward) for validation.
# ---------------------------------------------------------------------------
def encoder_block_reference(x, conv_w, conv_b, gamma, beta, mean, var, *, padding=1, eps=1e-5):
    y = lax.conv_general_dilated(
        x.astype(jnp.float32), conv_w.astype(jnp.float32),
        window_strides=(1, 1), padding=((padding, padding), (padding, padding)),
        dimension_numbers=("NCHW", "OIHW", "NCHW"))
    y = y + conv_b[None, :, None, None]
    y = (y - mean[None, :, None, None]) / jnp.sqrt(var[None, :, None, None] + eps)
    y = y * gamma[None, :, None, None] + beta[None, :, None, None]
    y = jnp.maximum(y, 0.0)
    N, C, H, W = y.shape
    y = y.reshape(N, C, H // 2, 2, W // 2, 2).max(axis=(3, 5))
    return y


if __name__ == "__main__":
    # EncoderBlock(in_channels=4, out_channels=8, kernel_size=3, stride=1, padding=1,
    #              norm=True, act=True, pool=True, dropout=0.1), eval mode.
    N, Cin, H, W = 2, 4, 16, 16
    Cout, K = 8, 3

    key = jax.random.PRNGKey(0)
    kx, kw, kb, kg, kbe, km, kv = jax.random.split(key, 7)

    x = jax.random.normal(kx, (N, Cin, H, W), dtype=jnp.float32)
    conv_w = jax.random.normal(kw, (Cout, Cin, K, K), dtype=jnp.float32) * 0.1
    conv_b = jax.random.normal(kb, (Cout,), dtype=jnp.float32) * 0.1
    bn_gamma = 1.0 + 0.1 * jax.random.normal(kg, (Cout,), dtype=jnp.float32)
    bn_beta = 0.1 * jax.random.normal(kbe, (Cout,), dtype=jnp.float32)
    bn_mean = 0.1 * jax.random.normal(km, (Cout,), dtype=jnp.float32)
    bn_var = jnp.abs(jax.random.normal(kv, (Cout,), dtype=jnp.float32)) + 0.5

    out = encoder_block_forward(x, conv_w, conv_b, bn_gamma, bn_beta, bn_mean, bn_var)
    out = jax.block_until_ready(out)

    ref = encoder_block_reference(x, conv_w, conv_b, bn_gamma, bn_beta, bn_mean, bn_var)
    assert out.shape == (N, Cout, H // 2, W // 2), out.shape
    # bf16 MXU operands -> looser tolerance than a pure-f32 conv.
    assert jnp.allclose(out, ref, atol=5e-2, rtol=5e-2), float(jnp.max(jnp.abs(out - ref)))

    print("KERNEL_OK")
</pallas_src>

<mosaic_0001>
module attributes {stable_mosaic.version = 11 : i64} {
  func.func @_encoder_block_kernel(%arg0: memref<512x128xbf16, #tpu.memory_space<vmem>>, %arg1: memref<128x128xbf16, #tpu.memory_space<vmem>>, %arg2: memref<1x128xf32, #tpu.memory_space<vmem>>, %arg3: memref<1x128xf32, #tpu.memory_space<vmem>>, %arg4: memref<128x128xf32, #tpu.memory_space<vmem>>) attributes {dimension_semantics = [], scalar_prefetch = 0 : i64, scratch_operands = 0 : i64, tpu.core_type = #tpu.core_type<tc>} {
    %c0 = arith.constant 0 : index
    %c0_0 = arith.constant 0 : index
    %0 = vector.load %arg1[%c0, %c0_0] : memref<128x128xbf16, #tpu.memory_space<vmem>>, vector<128x128xbf16>
    %c0_1 = arith.constant 0 : index
    %c0_2 = arith.constant 0 : index
    %1 = vector.load %arg2[%c0_1, %c0_2] : memref<1x128xf32, #tpu.memory_space<vmem>>, vector<1x128xf32>
    %c0_3 = arith.constant 0 : index
    %c0_4 = arith.constant 0 : index
    %2 = vector.load %arg0[%c0_3, %c0_4] : memref<512x128xbf16, #tpu.memory_space<vmem>>, vector<128x128xbf16>
    %cst = arith.constant dense<0.000000e+00> : vector<128x128xf32>
    %3 = tpu.matmul %2, %0, %cst {dimension_numbers = #tpu.dot_dimension_numbers<[1], [0], [0], [1], [0, 0, 1, 1], [], []>} : vector<128x128xbf16>, vector<128x128xbf16>, vector<128x128xf32> -> vector<128x128xf32>
    %4 = vector.broadcast %1 : vector<1x128xf32> to vector<128x128xf32>
    %5 = arith.mulf %3, %4 : vector<128x128xf32>
    %c128 = arith.constant 128 : index
    %c0_5 = arith.constant 0 : index
    %6 = vector.load %arg0[%c128, %c0_5] : memref<512x128xbf16, #tpu.memory_space<vmem>>, vector<128x128xbf16>
    %cst_6 = arith.constant dense<0.000000e+00> : vector<128x128xf32>
    %7 = tpu.matmul %6, %0, %cst_6 {dimension_numbers = #tpu.dot_dimension_numbers<[1], [0], [0], [1], [0, 0, 1, 1], [], []>} : vector<128x128xbf16>, vector<128x128xbf16>, vector<128x128xf32> -> vector<128x128xf32>
    %8 = vector.broadcast %1 : vector<1x128xf32> to vector<128x128xf32>
    %9 = arith.mulf %7, %8 : vector<128x128xf32>
    %10 = arith.maximumf %5, %9 : vector<128x128xf32>
    %c256 = arith.constant 256 : index
    %c0_7 = arith.constant 0 : index
    %11 = vector.load %arg0[%c256, %c0_7] : memref<512x128xbf16, #tpu.memory_space<vmem>>, vector<128x128xbf16>
    %cst_8 = arith.constant dense<0.000000e+00> : vector<128x128xf32>
    %12 = tpu.matmul %11, %0, %cst_8 {dimension_numbers = #tpu.dot_dimension_numbers<[1], [0], [0], [1], [0, 0, 1, 1], [], []>} : vector<128x128xbf16>, vector<128x128xbf16>, vector<128x128xf32> -> vector<128x128xf32>
    %13 = vector.broadcast %1 : vector<1x128xf32> to vector<128x128xf32>
    %14 = arith.mulf %12, %13 : vector<128x128xf32>
    %15 = arith.maximumf %10, %14 : vector<128x128xf32>
    %c384 = arith.constant 384 : index
    %c0_9 = arith.constant 0 : index
    %16 = vector.load %arg0[%c384, %c0_9] : memref<512x128xbf16, #tpu.memory_space<vmem>>, vector<128x128xbf16>
    %cst_10 = arith.constant dense<0.000000e+00> : vector<128x128xf32>
    %17 = tpu.matmul %16, %0, %cst_10 {dimension_numbers = #tpu.dot_dimension_numbers<[1], [0], [0], [1], [0, 0, 1, 1], [], []>} : vector<128x128xbf16>, vector<128x128xbf16>, vector<128x128xf32> -> vector<128x128xf32>
    %18 = vector.broadcast %1 : vector<1x128xf32> to vector<128x128xf32>
    %19 = arith.mulf %17, %18 : vector<128x128xf32>
    %20 = arith.maximumf %15, %19 : vector<128x128xf32>
    %c0_11 = arith.constant 0 : index
    %c0_12 = arith.constant 0 : index
    %21 = vector.load %arg3[%c0_11, %c0_12] : memref<1x128xf32, #tpu.memory_space<vmem>>, vector<1x128xf32>
    %22 = vector.broadcast %21 : vector<1x128xf32> to vector<128x128xf32>
    %23 = arith.addf %20, %22 : vector<128x128xf32>
    %cst_13 = arith.constant 0.000000e+00 : f32
    %24 = vector.broadcast %cst_13 : f32 to vector<128x128xf32>
    %25 = arith.maximumf %23, %24 : vector<128x128xf32>
    %c0_14 = arith.constant 0 : index
    %c0_15 = arith.constant 0 : index
    %26 = vector.load %arg4[%c0_14, %c0_15] : memref<128x128xf32, #tpu.memory_space<vmem>>, vector<128x128xf32>
    tpu.vector_store %arg4[%c0_14, %c0_15], %25 {strides = array<i32>} : memref<128x128xf32, #tpu.memory_space<vmem>>, vector<128x128xf32>,
    return
  }
}

</mosaic_0001>

<llo_original>
// kernel: tpu_custom_call.1
$region0: #{tpu_custom_call.1}
  #allocation0 [shape = 'u32[]', space=smem, size = 0x4, offset = 0x4, fixed_abs, tag = 'smem constant byte address 0x4 - core index']
  #allocation1 [shape = 'u32[144,128]{1,0:T(1,128)}', space=vmem, size = 0x12000, scoped, tag = 'internal scratch']
  %s0 = inlined_call_operand.hbm [shape: bf16[512,128], index: 0, kind: input, shape index: {}]
  %s1 = inlined_call_operand.hbm [shape: bf16[128,128], index: 1, kind: input, shape index: {}]
  %s2 = inlined_call_operand.vmem [shape: f32[1,128], index: 2, kind: input, shape index: {}]
  %s3 = inlined_call_operand.vmem [shape: f32[1,128], index: 3, kind: input, shape index: {}]
  %s4 = inlined_call_operand.hbm [shape: f32[128,128], index: 4, kind: output, shape index: {}]
  %s5 = sld [smem:[#allocation0]]
  $region34: #{tpu_custom_call.1} parent=0
    _
  %s7 = ssub.s32 1, %s5
  %s8 = scalar_select 0, %s7, %s5
  $region1: #{tpu_custom_call.1} parent=0
    #allocation2 [shape = 'u8[131072]{0}', space=vmem, size = 0x20000, scoped, tag = 'input window, operand 0, single buffered']
    #allocation3 [shape = 's32[1]{0}', space=sflag, size = 0x4, scoped, tag = 'scoped memory for tpu_custom_call.1']
    #allocation4 [shape = 's32[1]{0}', space=sflag, size = 0x4, scoped, tag = 'scoped memory for tpu_custom_call.1']
    #allocation5 [shape = 'u8[32768]{0}', space=vmem, size = 0x8000, scoped, tag = 'input window, operand 1, single buffered']
    #allocation6 [shape = 's32[1]{0}', space=sflag, size = 0x4, scoped, tag = 'scoped memory for tpu_custom_call.1']
    #allocation7 [shape = 'u8[65536]{0}', space=vmem, size = 0x10000, scoped, tag = 'output window, operand 0, single buffered']
    %9 = vsyncpa [#allocation3], 0
    %10 = vsyncpa [#allocation6], 0
    %11 = vsyncpa [#allocation4], 0
    // Predicated region
    $region2: #{tpu_custom_call.1} parent=1 // pred_check
      _
    $region3: #{tpu_custom_call.1} parent=1 // pred_check_branch
      %13 = sbr.rel (0) target = $region5
    $region4: #{tpu_custom_call.1} parent=1 // pred_region
      %s15 = ssub.s32 4096, 4096
      %16 = vsyncadd [#allocation3], %s15
      %s17 = sshll.u32 [#allocation2], 4
      %s18 = int_to_ptr.vmem [resolvable:$true] %s17
      %23 = dma.hbm_to_vmem [thread:$0]  %s0, 4096, %s18, [#allocation3], 64, 64, 4
    $region5: #{tpu_custom_call.1} parent=1 // pred_fallthru
      _
    // Predicated region
    $region6: #{tpu_custom_call.1} parent=1 // pred_check
      _
    $region7: #{tpu_custom_call.1} parent=1 // pred_check_branch
      %25 = sbr.rel (0) target = $region9
    $region8: #{tpu_custom_call.1} parent=1 // pred_region
      %s27 = ssub.s32 1024, 1024
      %28 = vsyncadd [#allocation6], %s27
      %s29 = sshll.u32 [#allocation5], 4
      %s30 = int_to_ptr.vmem [resolvable:$true] %s29
      %35 = dma.hbm_to_vmem [thread:$0]  %s1, 1024, %s30, [#allocation6], 64, 64, 4
    $region9: #{tpu_custom_call.1} parent=1 // pred_fallthru
      _
    // Predicated region
    $region10: #{tpu_custom_call.1} parent=1 // pred_check
      _
    $region11: #{tpu_custom_call.1} parent=1 // pred_check_branch
      %37 = sbr.rel (0) target = $region13
    $region12: #{tpu_custom_call.1} parent=1 // pred_region
      _
    $region13: #{tpu_custom_call.1} parent=1 // pred_fallthru
      _
    // Predicated region
    $region14: #{tpu_custom_call.1} parent=1 // pred_check
      _
    $region15: #{tpu_custom_call.1} parent=1 // pred_check_branch
      %39 = sbr.rel (0) target = $region17
    $region16: #{tpu_custom_call.1} parent=1 // pred_region
      _
    $region17: #{tpu_custom_call.1} parent=1 // pred_fallthru
      _
    // Predicated region
    $region18: #{tpu_custom_call.1} parent=1 // pred_check
      _
    $region19: #{tpu_custom_call.1} parent=1 // pred_check_branch
      %41 = sbr.rel (0) target = $region21
    $region20: #{tpu_custom_call.1} parent=1 // pred_region
      %42 = dma.done [#allocation3], 4096
    $region21: #{tpu_custom_call.1} parent=1 // pred_fallthru
      _
    // Predicated region
    $region22: #{tpu_custom_call.1} parent=1 // pred_check
      _
    $region23: #{tpu_custom_call.1} parent=1 // pred_check_branch
      %44 = sbr.rel (0) target = $region25
    $region24: #{tpu_custom_call.1} parent=1 // pred_region
      %45 = dma.done [#allocation6], 1024
    $region25: #{tpu_custom_call.1} parent=1 // pred_fallthru
      _
    %v47 = vld [vmem:[#allocation5] sm:$0xf]
    %v48 = vld [vmem:[#allocation5 + $0x4] sm:$0xf]
    %v49 = vld [vmem:[#allocation5 + $0x8] sm:$0xf]
    %v50 = vld [vmem:[#allocation5 + $0xc] sm:$0xf]
    %v51 = vld [vmem:[#allocation5 + $0x10] sm:$0xf]
    %v52 = vld [vmem:[#allocation5 + $0x14] sm:$0xf]
    %v53 = vld [vmem:[#allocation5 + $0x18] sm:$0xf]
    %v54 = vld [vmem:[#allocation5 + $0x1c] sm:$0xf]
    %v55 = vld [vmem:[#allocation5 + $0x20] sm:$0xf]
    %v56 = vld [vmem:[#allocation5 + $0x24] sm:$0xf]
    %v57 = vld [vmem:[#allocation5 + $0x28] sm:$0xf]
    %v58 = vld [vmem:[#allocation5 + $0x2c] sm:$0xf]
    %v59 = vld [vmem:[#allocation5 + $0x30] sm:$0xf]
    %v60 = vld [vmem:[#allocation5 + $0x34] sm:$0xf]
    %v61 = vld [vmem:[#allocation5 + $0x38] sm:$0xf]
    %v62 = vld [vmem:[#allocation5 + $0x3c] sm:$0xf]
    %v63 = vld [vmem:[%s2] sm:$0x1]
    %v64 = vld [vmem:[#allocation2] sm:$0xf]
    %v65 = vld [vmem:[#allocation2 + $0x4] sm:$0xf]
    %v66 = vld [vmem:[#allocation2 + $0x8] sm:$0xf]
    %v67 = vld [vmem:[#allocation2 + $0xc] sm:$0xf]
    %v68 = vld [vmem:[#allocation2 + $0x10] sm:$0xf]
    %v69 = vld [vmem:[#allocation2 + $0x14] sm:$0xf]
    %v70 = vld [vmem:[#allocation2 + $0x18] sm:$0xf]
    %v71 = vld [vmem:[#allocation2 + $0x1c] sm:$0xf]
    %v72 = vld [vmem:[#allocation2 + $0x20] sm:$0xf]
    %v73 = vld [vmem:[#allocation2 + $0x24] sm:$0xf]
    %v74 = vld [vmem:[#allocation2 + $0x28] sm:$0xf]
    %v75 = vld [vmem:[#allocation2 + $0x2c] sm:$0xf]
    %v76 = vld [vmem:[#allocation2 + $0x30] sm:$0xf]
    %v77 = vld [vmem:[#allocation2 + $0x34] sm:$0xf]
    %v78 = vld [vmem:[#allocation2 + $0x38] sm:$0xf]
    %v79 = vld [vmem:[#allocation2 + $0x3c] sm:$0xf]
    %v96 = vunpack.c.l.b16 %v64
    %v97 = vunpack.c.l.b16 %v65
    %v98 = vunpack.c.l.b16 %v66
    %v99 = vunpack.c.l.b16 %v67
    %v100 = vunpack.c.l.b16 %v68
    %v101 = vunpack.c.l.b16 %v69
    %v102 = vunpack.c.l.b16 %v70
    %v103 = vunpack.c.l.b16 %v71
    %v104 = vunpack.c.l.b16 %v72
    %v105 = vunpack.c.l.b16 %v73
    %v106 = vunpack.c.l.b16 %v74
    %v107 = vunpack.c.l.b16 %v75
    %v108 = vunpack.c.l.b16 %v76
    %v109 = vunpack.c.l.b16 %v77
    %v110 = vunpack.c.l.b16 %v78
    %v111 = vunpack.c.l.b16 %v79
    %v112 = vpack.c.b16 %v97, %v96
    %v113 = vpack.c.b16 %v99, %v98
    %v114 = vpack.c.b16 %v101, %v100
    %v115 = vpack.c.b16 %v103, %v102
    %v116 = vpack.c.b16 %v105, %v104
    %v117 = vpack.c.b16 %v107, %v106
    %v118 = vpack.c.b16 %v109, %v108
    %v119 = vpack.c.b16 %v111, %v110
    %v144 = vunpack.c.l.b16 %v47
    %v145 = vunpack.c.l.b16 %v48
    %v146 = vunpack.c.l.b16 %v49
    %v147 = vunpack.c.l.b16 %v50
    %v148 = vunpack.c.l.b16 %v51
    %v149 = vunpack.c.l.b16 %v52
    %v150 = vunpack.c.l.b16 %v53
    %v151 = vunpack.c.l.b16 %v54
    %v152 = vunpack.c.l.b16 %v55
    %v153 = vunpack.c.l.b16 %v56
    %v154 = vunpack.c.l.b16 %v57
    %v155 = vunpack.c.l.b16 %v58
    %v156 = vunpack.c.l.b16 %v59
    %v157 = vunpack.c.l.b16 %v60
    %v158 = vunpack.c.l.b16 %v61
    %v159 = vunpack.c.l.b16 %v62
    %v160 = vpack.c.b16 %v145, %v144
    %v161 = vpack.c.b16 %v147, %v146
    %v162 = vpack.c.b16 %v149, %v148
    %v163 = vpack.c.b16 %v151, %v150
    %v164 = vpack.c.b16 %v153, %v152
    %v165 = vpack.c.b16 %v155, %v154
    %v166 = vpack.c.b16 %v157, %v156
    %v167 = vpack.c.b16 %v159, %v158
    %176 = vmatprep.subr.bf16.mxu0 0
    %177 = vmatpush1.bf16.msra.mxu0 %v167
    %178 = vmatprep.subr.bf16.mxu0 0
    %179 = vmatpush1.bf16.msra.mxu0 %v166
    %180 = vmatprep.subr.bf16.mxu0 0
    %181 = vmatpush1.bf16.msra.mxu0 %v165
    %182 = vmatprep.subr.bf16.mxu0 0
    %183 = vmatpush1.bf16.msra.mxu0 %v164
    %184 = vmatprep.subr.bf16.mxu0 0
    %185 = vmatpush1.bf16.msra.mxu0 %v163
    %186 = vmatprep.subr.bf16.mxu0 0
    %187 = vmatpush1.bf16.msra.mxu0 %v162
    %188 = vmatprep.subr.bf16.mxu0 0
    %189 = vmatpush1.bf16.msra.mxu0 %v161
    %190 = vmatprep.subr.bf16.mxu0 0
    %191 = vmatpush1.bf16.msra.mxu0 %v160
    %192 = vmatprep.subr.bf16.mxu0 0
    %193 = vmatpush2.bf16.msra.mxu0 0
    %194 = vmatprep.subr.bf16.mxu0 0
    %195 = vmatpush2.bf16.msra.mxu0 0
    %196 = vmatprep.subr.bf16.mxu0 0
    %197 = vmatpush2.bf16.msra.mxu0 0
    %198 = vmatprep.subr.bf16.mxu0 0
    %199 = vmatpush2.bf16.msra.mxu0 0
    %200 = vmatprep.subr.bf16.mxu0 0
    %201 = vmatpush2.bf16.msra.mxu0 0
    %202 = vmatprep.subr.bf16.mxu0 0
    %203 = vmatpush2.bf16.msra.mxu0 0
    %204 = vmatprep.subr.bf16.mxu0 0
    %205 = vmatpush2.bf16.msra.mxu0 0
    %206 = vmatprep.subr.bf16.mxu0 0
    %207 = vmatpush2.bf16.msra.mxu0 0
    %208 = vmatprep.mubr.bf16.mxu0 0
    %209 = vmatmul.mubr.bf16.gmra.mxu0 %v112
    %v210 = vpop.f32.mrf.mxu0
    %v211 = vadd.f32 0.0, %v210
    %v212 = vpop.f32.mrf.mxu0
    %v213 = vpop.f32.mrf.mxu0
    %v214 = vadd.f32 0.0, %v213
    %v215 = vpop.f32.mrf.mxu0
    %216 = vmatprep.mubr.bf16.mxu0 0
    %217 = vmatmul.mubr.bf16.gmra.mxu0 %v113
    %v218 = vpop.f32.mrf.mxu0
    %v219 = vadd.f32 0.0, %v218
    %v220 = vpop.f32.mrf.mxu0
    %v221 = vpop.f32.mrf.mxu0
    %v222 = vadd.f32 0.0, %v221
    %v223 = vpop.f32.mrf.mxu0
    %224 = vmatprep.mubr.bf16.mxu0 0
    %225 = vmatmul.mubr.bf16.gmra.mxu0 %v114
    %v226 = vpop.f32.mrf.mxu0
    %v227 = vadd.f32 0.0, %v226
    %v228 = vpop.f32.mrf.mxu0
    %v229 = vpop.f32.mrf.mxu0
    %v230 = vadd.f32 0.0, %v229
    %v231 = vpop.f32.mrf.mxu0
    %232 = vmatprep.mubr.bf16.mxu0 0
    %233 = vmatmul.mubr.bf16.gmra.mxu0 %v115
    %v234 = vpop.f32.mrf.mxu0
    %v235 = vadd.f32 0.0, %v234
    %v236 = vpop.f32.mrf.mxu0
    %v237 = vpop.f32.mrf.mxu0
    %v238 = vadd.f32 0.0, %v237
    %v239 = vpop.f32.mrf.mxu0
    %240 = vmatprep.mubr.bf16.mxu0 0
    %241 = vmatmul.mubr.bf16.gmra.mxu0 %v116
    %v242 = vpop.f32.mrf.mxu0
    %v243 = vadd.f32 0.0, %v242
    %v244 = vpop.f32.mrf.mxu0
    %v245 = vpop.f32.mrf.mxu0
    %v246 = vadd.f32 0.0, %v245
    %v247 = vpop.f32.mrf.mxu0
    %248 = vmatprep.mubr.bf16.mxu0 0
    %249 = vmatmul.mubr.bf16.gmra.mxu0 %v117
    %v250 = vpop.f32.mrf.mxu0
    %v251 = vadd.f32 0.0, %v250
    %v252 = vpop.f32.mrf.mxu0
    %v253 = vpop.f32.mrf.mxu0
    %v254 = vadd.f32 0.0, %v253
    %v255 = vpop.f32.mrf.mxu0
    %256 = vmatprep.mubr.bf16.mxu0 0
    %257 = vmatmul.mubr.bf16.gmra.mxu0 %v118
    %v258 = vpop.f32.mrf.mxu0
    %v259 = vadd.f32 0.0, %v258
    %v260 = vpop.f32.mrf.mxu0
    %v261 = vpop.f32.mrf.mxu0
    %v262 = vadd.f32 0.0, %v261
    %v263 = vpop.f32.mrf.mxu0
    %264 = vmatprep.mubr.bf16.mxu0 0
    %265 = vmatmul.mubr.bf16.gmra.mxu0 %v119
    %v266 = vpop.f32.mrf.mxu0
    %v267 = vadd.f32 0.0, %v266
    %v268 = vpop.f32.mrf.mxu0
    %v269 = vpop.f32.mrf.mxu0
    %v270 = vadd.f32 0.0, %v269
    %v271 = vpop.f32.mrf.mxu0
    %272 = vdwg.mxu0
    %v274 = vlaneseq
    %v275 = vshrl.u32 %v274, 7
    %v276 = vsub.s32 0, %v275
    %v277 = vrot.slane %v63, %v276
    %v279 = vmul.f32 %v211, %v277
    %v280 = vmul.f32 %v214, %v277
    %v281 = vmul.f32 %v219, %v277
    %v282 = vmul.f32 %v222, %v277
    %v283 = vmul.f32 %v227, %v277
    %v284 = vmul.f32 %v230, %v277
    %v285 = vmul.f32 %v235, %v277
    %v286 = vmul.f32 %v238, %v277
    %v287 = vmul.f32 %v243, %v277
    %v288 = vmul.f32 %v246, %v277
    %v289 = vmul.f32 %v251, %v277
    %v290 = vmul.f32 %v254, %v277
    %v291 = vmul.f32 %v259, %v277
    %v292 = vmul.f32 %v262, %v277
    %v293 = vmul.f32 %v267, %v277
    %v294 = vmul.f32 %v270, %v277
    %v295 = vld [vmem:[#allocation2 + $0x40] sm:$0xf]
    %v296 = vld [vmem:[#allocation2 + $0x44] sm:$0xf]
    %v297 = vld [vmem:[#allocation2 + $0x48] sm:$0xf]
    %v298 = vld [vmem:[#allocation2 + $0x4c] sm:$0xf]
    %v299 = vld [vmem:[#allocation2 + $0x50] sm:$0xf]
    %v300 = vld [vmem:[#allocation2 + $0x54] sm:$0xf]
    %v301 = vld [vmem:[#allocation2 + $0x58] sm:$0xf]
    %v302 = vld [vmem:[#allocation2 + $0x5c] sm:$0xf]
    %v303 = vld [vmem:[#allocation2 + $0x60] sm:$0xf]
    %v304 = vld [vmem:[#allocation2 + $0x64] sm:$0xf]
    %v305 = vld [vmem:[#allocation2 + $0x68] sm:$0xf]
    %v306 = vld [vmem:[#allocation2 + $0x6c] sm:$0xf]
    %v307 = vld [vmem:[#allocation2 + $0x70] sm:$0xf]
    %v308 = vld [vmem:[#allocation2 + $0x74] sm:$0xf]
    %v309 = vld [vmem:[#allocation2 + $0x78] sm:$0xf]
    %v310 = vld [vmem:[#allocation2 + $0x7c] sm:$0xf]
    %v327 = vunpack.c.l.b16 %v295
    %v328 = vunpack.c.l.b16 %v296
    %v329 = vunpack.c.l.b16 %v297
    %v330 = vunpack.c.l.b16 %v298
    %v331 = vunpack.c.l.b16 %v299
    %v332 = vunpack.c.l.b16 %v300
    %v333 = vunpack.c.l.b16 %v301
    %v334 = vunpack.c.l.b16 %v302
    %v335 = vunpack.c.l.b16 %v303
    %v336 = vunpack.c.l.b16 %v304
    %v337 = vunpack.c.l.b16 %v305
    %v338 = vunpack.c.l.b16 %v306
    %v339 = vunpack.c.l.b16 %v307
    %v340 = vunpack.c.l.b16 %v308
    %v341 = vunpack.c.l.b16 %v309
    %v342 = vunpack.c.l.b16 %v310
    %v343 = vpack.c.b16 %v328, %v327
    %v344 = vpack.c.b16 %v330, %v329
    %v345 = vpack.c.b16 %v332, %v331
    %v346 = vpack.c.b16 %v334, %v333
    %v347 = vpack.c.b16 %v336, %v335
    %v348 = vpack.c.b16 %v338, %v337
    %v349 = vpack.c.b16 %v340, %v339
    %v350 = vpack.c.b16 %v342, %v341
    %359 = vmatprep.subr.bf16.mxu0 0
    %360 = vmatpush1.bf16.msra.mxu0 %v167
    %361 = vmatprep.subr.bf16.mxu0 0
    %362 = vmatpush1.bf16.msra.mxu0 %v166
    %363 = vmatprep.subr.bf16.mxu0 0
    %364 = vmatpush1.bf16.msra.mxu0 %v165
    %365 = vmatprep.subr.bf16.mxu0 0
    %366 = vmatpush1.bf16.msra.mxu0 %v164
    %367 = vmatprep.subr.bf16.mxu0 0
    %368 = vmatpush1.bf16.msra.mxu0 %v163
    %369 = vmatprep.subr.bf16.mxu0 0
    %370 = vmatpush1.bf16.msra.mxu0 %v162
    %371 = vmatprep.subr.bf16.mxu0 0
    %372 = vmatpush1.bf16.msra.mxu0 %v161
    %373 = vmatprep.subr.bf16.mxu0 0
    %374 = vmatpush1.bf16.msra.mxu0 %v160
    %375 = vmatprep.subr.bf16.mxu0 0
    %376 = vmatpush2.bf16.msra.mxu0 0
    %377 = vmatprep.subr.bf16.mxu0 0
    %378 = vmatpush2.bf16.msra.mxu0 0
    %379 = vmatprep.subr.bf16.mxu0 0
    %380 = vmatpush2.bf16.msra.mxu0 0
    %381 = vmatprep.subr.bf16.mxu0 0
    %382 = vmatpush2.bf16.msra.mxu0 0
    %383 = vmatprep.subr.bf16.mxu0 0
    %384 = vmatpush2.bf16.msra.mxu0 0
    %385 = vmatprep.subr.bf16.mxu0 0
    %386 = vmatpush2.bf16.msra.mxu0 0
    %387 = vmatprep.subr.bf16.mxu0 0
    %388 = vmatpush2.bf16.msra.mxu0 0
    %389 = vmatprep.subr.bf16.mxu0 0
    %390 = vmatpush2.bf16.msra.mxu0 0
    %391 = vmatprep.mubr.bf16.mxu0 0
    %392 = vmatmul.mubr.bf16.gmra.mxu0 %v343
    %v393 = vpop.f32.mrf.mxu0
    %v394 = vadd.f32 0.0, %v393
    %v395 = vpop.f32.mrf.mxu0
    %v396 = vpop.f32.mrf.mxu0
    %v397 = vadd.f32 0.0, %v396
    %v398 = vpop.f32.mrf.mxu0
    %399 = vmatprep.mubr.bf16.mxu0 0
    %400 = vmatmul.mubr.bf16.gmra.mxu0 %v344
    %v401 = vpop.f32.mrf.mxu0
    %v402 = vadd.f32 0.0, %v401
    %v403 = vpop.f32.mrf.mxu0
    %v404 = vpop.f32.mrf.mxu0
    %v405 = vadd.f32 0.0, %v404
    %v406 = vpop.f32.mrf.mxu0
    %407 = vmatprep.mubr.bf16.mxu0 0
    %408 = vmatmul.mubr.bf16.gmra.mxu0 %v345
    %v409 = vpop.f32.mrf.mxu0
    %v410 = vadd.f32 0.0, %v409
    %v411 = vpop.f32.mrf.mxu0
    %v412 = vpop.f32.mrf.mxu0
    %v413 = vadd.f32 0.0, %v412
    %v414 = vpop.f32.mrf.mxu0
    %415 = vmatprep.mubr.bf16.mxu0 0
    %416 = vmatmul.mubr.bf16.gmra.mxu0 %v346
    %v417 = vpop.f32.mrf.mxu0
    %v418 = vadd.f32 0.0, %v417
    %v419 = vpop.f32.mrf.mxu0
    %v420 = vpop.f32.mrf.mxu0
    %v421 = vadd.f32 0.0, %v420
    %v422 = vpop.f32.mrf.mxu0
    %423 = vmatprep.mubr.bf16.mxu0 0
    %424 = vmatmul.mubr.bf16.gmra.mxu0 %v347
    %v425 = vpop.f32.mrf.mxu0
    %v426 = vadd.f32 0.0, %v425
    %v427 = vpop.f32.mrf.mxu0
    %v428 = vpop.f32.mrf.mxu0
    %v429 = vadd.f32 0.0, %v428
    %v430 = vpop.f32.mrf.mxu0
    %431 = vmatprep.mubr.bf16.mxu0 0
    %432 = vmatmul.mubr.bf16.gmra.mxu0 %v348
    %v433 = vpop.f32.mrf.mxu0
    %v434 = vadd.f32 0.0, %v433
    %v435 = vpop.f32.mrf.mxu0
    %v436 = vpop.f32.mrf.mxu0
    %v437 = vadd.f32 0.0, %v436
    %v438 = vpop.f32.mrf.mxu0
    %439 = vmatprep.mubr.bf16.mxu0 0
    %440 = vmatmul.mubr.bf16.gmra.mxu0 %v349
    %v441 = vpop.f32.mrf.mxu0
    %v442 = vadd.f32 0.0, %v441
    %v443 = vpop.f32.mrf.mxu0
    %v444 = vpop.f32.mrf.mxu0
    %v445 = vadd.f32 0.0, %v444
    %v446 = vpop.f32.mrf.mxu0
    %447 = vmatprep.mubr.bf16.mxu0 0
    %448 = vmatmul.mubr.bf16.gmra.mxu0 %v350
    %v449 = vpop.f32.mrf.mxu0
    %v450 = vadd.f32 0.0, %v449
    %v451 = vpop.f32.mrf.mxu0
    %v452 = vpop.f32.mrf.mxu0
    %v453 = vadd.f32 0.0, %v452
    %v454 = vpop.f32.mrf.mxu0
    %455 = vdwg.mxu0
    %v456 = vmul.f32 %v394, %v277
    %v457 = vmul.f32 %v397, %v277
    %v458 = vmul.f32 %v402, %v277
    %v459 = vmul.f32 %v405, %v277
    %v460 = vmul.f32 %v410, %v277
    %v461 = vmul.f32 %v413, %v277
    %v462 = vmul.f32 %v418, %v277
    %v463 = vmul.f32 %v421, %v277
    %v464 = vmul.f32 %v426, %v277
    %v465 = vmul.f32 %v429, %v277
    %v466 = vmul.f32 %v434, %v277
    %v467 = vmul.f32 %v437, %v277
    %v468 = vmul.f32 %v442, %v277
    %v469 = vmul.f32 %v445, %v277
    %v470 = vmul.f32 %v450, %v277
    %v471 = vmul.f32 %v453, %v277
    %v472 = vmax.f32 %v279, %v456
    %v473 = vmax.f32 %v280, %v457
    %v474 = vmax.f32 %v281, %v458
    %v475 = vmax.f32 %v282, %v459
    %v476 = vmax.f32 %v283, %v460
    %v477 = vmax.f32 %v284, %v461
    %v478 = vmax.f32 %v285, %v462
    %v479 = vmax.f32 %v286, %v463
    %v480 = vmax.f32 %v287, %v464
    %v481 = vmax.f32 %v288, %v465
    %v482 = vmax.f32 %v289, %v466
    %v483 = vmax.f32 %v290, %v467
    %v484 = vmax.f32 %v291, %v468
    %v485 = vmax.f32 %v292, %v469
    %v486 = vmax.f32 %v293, %v470
    %v487 = vmax.f32 %v294, %v471
    %v488 = vld [vmem:[#allocation2 + $0x80] sm:$0xf]
    %v489 = vld [vmem:[#allocation2 + $0x84] sm:$0xf]
    %v490 = vld [vmem:[#allocation2 + $0x88] sm:$0xf]
    %v491 = vld [vmem:[#allocation2 + $0x8c] sm:$0xf]
    %v492 = vld [vmem:[#allocation2 + $0x90] sm:$0xf]
    %v493 = vld [vmem:[#allocation2 + $0x94] sm:$0xf]
    %v494 = vld [vmem:[#allocation2 + $0x98] sm:$0xf]
    %v495 = vld [vmem:[#allocation2 + $0x9c] sm:$0xf]
    %v496 = vld [vmem:[#allocation2 + $0xa0] sm:$0xf]
    %v497 = vld [vmem:[#allocation2 + $0xa4] sm:$0xf]
    %v498 = vld [vmem:[#allocation2 + $0xa8] sm:$0xf]
    %v499 = vld [vmem:[#allocation2 + $0xac] sm:$0xf]
    %v500 = vld [vmem:[#allocation2 + $0xb0] sm:$0xf]
    %v501 = vld [vmem:[#allocation2 + $0xb4] sm:$0xf]
    %v502 = vld [vmem:[#allocation2 + $0xb8] sm:$0xf]
    %v503 = vld [vmem:[#allocation2 + $0xbc] sm:$0xf]
    %v520 = vunpack.c.l.b16 %v488
    %v521 = vunpack.c.l.b16 %v489
    %v522 = vunpack.c.l.b16 %v490
    %v523 = vunpack.c.l.b16 %v491
    %v524 = vunpack.c.l.b16 %v492
    %v525 = vunpack.c.l.b16 %v493
    %v526 = vunpack.c.l.b16 %v494
    %v527 = vunpack.c.l.b16 %v495
    %v528 = vunpack.c.l.b16 %v496
    %v529 = vunpack.c.l.b16 %v497
    %v530 = vunpack.c.l.b16 %v498
    %v531 = vunpack.c.l.b16 %v499
    %v532 = vunpack.c.l.b16 %v500
    %v533 = vunpack.c.l.b16 %v501
    %v534 = vunpack.c.l.b16 %v502
    %v535 = vunpack.c.l.b16 %v503
    %v536 = vpack.c.b16 %v521, %v520
    %v537 = vpack.c.b16 %v523, %v522
    %v538 = vpack.c.b16 %v525, %v524
    %v539 = vpack.c.b16 %v527, %v526
    %v540 = vpack.c.b16 %v529, %v528
    %v541 = vpack.c.b16 %v531, %v530
    %v542 = vpack.c.b16 %v533, %v532
    %v543 = vpack.c.b16 %v535, %v534
    %552 = vmatprep.subr.bf16.mxu0 0
    %553 = vmatpush1.bf16.msra.mxu0 %v167
    %554 = vmatprep.subr.bf16.mxu0 0
    %555 = vmatpush1.bf16.msra.mxu0 %v166
    %556 = vmatprep.subr.bf16.mxu0 0
    %557 = vmatpush1.bf16.msra.mxu0 %v165
    %558 = vmatprep.subr.bf16.mxu0 0
    %559 = vmatpush1.bf16.msra.mxu0 %v164
    %560 = vmatprep.subr.bf16.mxu0 0
    %561 = vmatpush1.bf16.msra.mxu0 %v163
    %562 = vmatprep.subr.bf16.mxu0 0
    %563 = vmatpush1.bf16.msra.mxu0 %v162
    %564 = vmatprep.subr.bf16.mxu0 0
    %565 = vmatpush1.bf16.msra.mxu0 %v161
    %566 = vmatprep.subr.bf16.mxu0 0
    %567 = vmatpush1.bf16.msra.mxu0 %v160
    %568 = vmatprep.subr.bf16.mxu0 0
    %569 = vmatpush2.bf16.msra.mxu0 0
    %570 = vmatprep.subr.bf16.mxu0 0
    %571 = vmatpush2.bf16.msra.mxu0 0
    %572 = vmatprep.subr.bf16.mxu0 0
    %573 = vmatpush2.bf16.msra.mxu0 0
    %574 = vmatprep.subr.bf16.mxu0 0
    %575 = vmatpush2.bf16.msra.mxu0 0
    %576 = vmatprep.subr.bf16.mxu0 0
    %577 = vmatpush2.bf16.msra.mxu0 0
    %578 = vmatprep.subr.bf16.mxu0 0
    %579 = vmatpush2.bf16.msra.mxu0 0
    %580 = vmatprep.subr.bf16.mxu0 0
    %581 = vmatpush2.bf16.msra.mxu0 0
    %582 = vmatprep.subr.bf16.mxu0 0
    %583 = vmatpush2.bf16.msra.mxu0 0
    %584 = vmatprep.mubr.bf16.mxu0 0
    %585 = vmatmul.mubr.bf16.gmra.mxu0 %v536
    %v586 = vpop.f32.mrf.mxu0
    %v587 = vadd.f32 0.0, %v586
    %v588 = vpop.f32.mrf.mxu0
    %v589 = vpop.f32.mrf.mxu0
    %v590 = vadd.f32 0.0, %v589
    %v591 = vpop.f32.mrf.mxu0
    %592 = vmatprep.mubr.bf16.mxu0 0
    %593 = vmatmul.mubr.bf16.gmra.mxu0 %v537
    %v594 = vpop.f32.mrf.mxu0
    %v595 = vadd.f32 0.0, %v594
    %v596 = vpop.f32.mrf.mxu0
    %v597 = vpop.f32.mrf.mxu0
    %v598 = vadd.f32 0.0, %v597
    %v599 = vpop.f32.mrf.mxu0
    %600 = vmatprep.mubr.bf16.mxu0 0
    %601 = vmatmul.mubr.bf16.gmra.mxu0 %v538
    %v602 = vpop.f32.mrf.mxu0
    %v603 = vadd.f32 0.0, %v602
    %v604 = vpop.f32.mrf.mxu0
    %v605 = vpop.f32.mrf.mxu0
    %v606 = vadd.f32 0.0, %v605
    %v607 = vpop.f32.mrf.mxu0
    %608 = vmatprep.mubr.bf16.mxu0 0
    %609 = vmatmul.mubr.bf16.gmra.mxu0 %v539
    %v610 = vpop.f32.mrf.mxu0
    %v611 = vadd.f32 0.0, %v610
    %v612 = vpop.f32.mrf.mxu0
    %v613 = vpop.f32.mrf.mxu0
    %v614 = vadd.f32 0.0, %v613
    %v615 = vpop.f32.mrf.mxu0
    %616 = vmatprep.mubr.bf16.mxu0 0
    %617 = vmatmul.mubr.bf16.gmra.mxu0 %v540
    %v618 = vpop.f32.mrf.mxu0
    %v619 = vadd.f32 0.0, %v618
    %v620 = vpop.f32.mrf.mxu0
    %v621 = vpop.f32.mrf.mxu0
    %v622 = vadd.f32 0.0, %v621
    %v623 = vpop.f32.mrf.mxu0
    %624 = vmatprep.mubr.bf16.mxu0 0
    %625 = vmatmul.mubr.bf16.gmra.mxu0 %v541
    %v626 = vpop.f32.mrf.mxu0
    %v627 = vadd.f32 0.0, %v626
    %v628 = vpop.f32.mrf.mxu0
    %v629 = vpop.f32.mrf.mxu0
    %v630 = vadd.f32 0.0, %v629
    %v631 = vpop.f32.mrf.mxu0
    %632 = vmatprep.mubr.bf16.mxu0 0
    %633 = vmatmul.mubr.bf16.gmra.mxu0 %v542
    %v634 = vpop.f32.mrf.mxu0
    %v635 = vadd.f32 0.0, %v634
    %v636 = vpop.f32.mrf.mxu0
    %v637 = vpop.f32.mrf.mxu0
    %v638 = vadd.f32 0.0, %v637
    %v639 = vpop.f32.mrf.mxu0
    %640 = vmatprep.mubr.bf16.mxu0 0
    %641 = vmatmul.mubr.bf16.gmra.mxu0 %v543
    %v642 = vpop.f32.mrf.mxu0
    %v643 = vadd.f32 0.0, %v642
    %v644 = vpop.f32.mrf.mxu0
    %v645 = vpop.f32.mrf.mxu0
    %v646 = vadd.f32 0.0, %v645
    %v647 = vpop.f32.mrf.mxu0
    %648 = vdwg.mxu0
    %v649 = vmul.f32 %v587, %v277
    %v650 = vmul.f32 %v590, %v277
    %v651 = vmul.f32 %v595, %v277
    %v652 = vmul.f32 %v598, %v277
    %v653 = vmul.f32 %v603, %v277
    %v654 = vmul.f32 %v606, %v277
    %v655 = vmul.f32 %v611, %v277
    %v656 = vmul.f32 %v614, %v277
    %v657 = vmul.f32 %v619, %v277
    %v658 = vmul.f32 %v622, %v277
    %v659 = vmul.f32 %v627, %v277
    %v660 = vmul.f32 %v630, %v277
    %v661 = vmul.f32 %v635, %v277
    %v662 = vmul.f32 %v638, %v277
    %v663 = vmul.f32 %v643, %v277
    %v664 = vmul.f32 %v646, %v277
    %v665 = vmax.f32 %v472, %v649
    %v666 = vmax.f32 %v473, %v650
    %v667 = vmax.f32 %v474, %v651
    %v668 = vmax.f32 %v475, %v652
    %v669 = vmax.f32 %v476, %v653
    %v670 = vmax.f32 %v477, %v654
    %v671 = vmax.f32 %v478, %v655
    %v672 = vmax.f32 %v479, %v656
    %v673 = vmax.f32 %v480, %v657
    %v674 = vmax.f32 %v481, %v658
    %v675 = vmax.f32 %v482, %v659
    %v676 = vmax.f32 %v483, %v660
    %v677 = vmax.f32 %v484, %v661
    %v678 = vmax.f32 %v485, %v662
    %v679 = vmax.f32 %v486, %v663
    %v680 = vmax.f32 %v487, %v664
    %v681 = vld [vmem:[#allocation2 + $0xc0] sm:$0xf]
    %v682 = vld [vmem:[#allocation2 + $0xc4] sm:$0xf]
    %v683 = vld [vmem:[#allocation2 + $0xc8] sm:$0xf]
    %v684 = vld [vmem:[#allocation2 + $0xcc] sm:$0xf]
    %v685 = vld [vmem:[#allocation2 + $0xd0] sm:$0xf]
    %v686 = vld [vmem:[#allocation2 + $0xd4] sm:$0xf]
    %v687 = vld [vmem:[#allocation2 + $0xd8] sm:$0xf]
    %v688 = vld [vmem:[#allocation2 + $0xdc] sm:$0xf]
    %v689 = vld [vmem:[#allocation2 + $0xe0] sm:$0xf]
    %v690 = vld [vmem:[#allocation2 + $0xe4] sm:$0xf]
    %v691 = vld [vmem:[#allocation2 + $0xe8] sm:$0xf]
    %v692 = vld [vmem:[#allocation2 + $0xec] sm:$0xf]
    %v693 = vld [vmem:[#allocation2 + $0xf0] sm:$0xf]
    %v694 = vld [vmem:[#allocation2 + $0xf4] sm:$0xf]
    %v695 = vld [vmem:[#allocation2 + $0xf8] sm:$0xf]
    %v696 = vld [vmem:[#allocation2 + $0xfc] sm:$0xf]
    %v713 = vunpack.c.l.b16 %v681
    %v714 = vunpack.c.l.b16 %v682
    %v715 = vunpack.c.l.b16 %v683
    %v716 = vunpack.c.l.b16 %v684
    %v717 = vunpack.c.l.b16 %v685
    %v718 = vunpack.c.l.b16 %v686
    %v719 = vunpack.c.l.b16 %v687
    %v720 = vunpack.c.l.b16 %v688
    %v721 = vunpack.c.l.b16 %v689
    %v722 = vunpack.c.l.b16 %v690
    %v723 = vunpack.c.l.b16 %v691
    %v724 = vunpack.c.l.b16 %v692
    %v725 = vunpack.c.l.b16 %v693
    %v726 = vunpack.c.l.b16 %v694
    %v727 = vunpack.c.l.b16 %v695
    %v728 = vunpack.c.l.b16 %v696
    %v729 = vpack.c.b16 %v714, %v713
    %v730 = vpack.c.b16 %v716, %v715
    %v731 = vpack.c.b16 %v718, %v717
    %v732 = vpack.c.b16 %v720, %v719
    %v733 = vpack.c.b16 %v722, %v721
    %v734 = vpack.c.b16 %v724, %v723
    %v735 = vpack.c.b16 %v726, %v725
    %v736 = vpack.c.b16 %v728, %v727
    %745 = vmatprep.subr.bf16.mxu0 0
    %746 = vmatpush1.bf16.msra.mxu0 %v167
    %747 = vmatprep.subr.bf16.mxu0 0
    %748 = vmatpush1.bf16.msra.mxu0 %v166
    %749 = vmatprep.subr.bf16.mxu0 0
    %750 = vmatpush1.bf16.msra.mxu0 %v165
    %751 = vmatprep.subr.bf16.mxu0 0
    %752 = vmatpush1.bf16.msra.mxu0 %v164
    %753 = vmatprep.subr.bf16.mxu0 0
    %754 = vmatpush1.bf16.msra.mxu0 %v163
    %755 = vmatprep.subr.bf16.mxu0 0
    %756 = vmatpush1.bf16.msra.mxu0 %v162
    %757 = vmatprep.subr.bf16.mxu0 0
    %758 = vmatpush1.bf16.msra.mxu0 %v161
    %759 = vmatprep.subr.bf16.mxu0 0
    %760 = vmatpush1.bf16.msra.mxu0 %v160
    %761 = vmatprep.subr.bf16.mxu0 0
    %762 = vmatpush2.bf16.msra.mxu0 0
    %763 = vmatprep.subr.bf16.mxu0 0
    %764 = vmatpush2.bf16.msra.mxu0 0
    %765 = vmatprep.subr.bf16.mxu0 0
    %766 = vmatpush2.bf16.msra.mxu0 0
    %767 = vmatprep.subr.bf16.mxu0 0
    %768 = vmatpush2.bf16.msra.mxu0 0
    %769 = vmatprep.subr.bf16.mxu0 0
    %770 = vmatpush2.bf16.msra.mxu0 0
    %771 = vmatprep.subr.bf16.mxu0 0
    %772 = vmatpush2.bf16.msra.mxu0 0
    %773 = vmatprep.subr.bf16.mxu0 0
    %774 = vmatpush2.bf16.msra.mxu0 0
    %775 = vmatprep.subr.bf16.mxu0 0
    %776 = vmatpush2.bf16.msra.mxu0 0
    %777 = vmatprep.mubr.bf16.mxu0 0
    %778 = vmatmul.mubr.bf16.gmra.mxu0 %v729
    %v779 = vpop.f32.mrf.mxu0
    %v780 = vadd.f32 0.0, %v779
    %v781 = vpop.f32.mrf.mxu0
    %v782 = vpop.f32.mrf.mxu0
    %v783 = vadd.f32 0.0, %v782
    %v784 = vpop.f32.mrf.mxu0
    %785 = vmatprep.mubr.bf16.mxu0 0
    %786 = vmatmul.mubr.bf16.gmra.mxu0 %v730
    %v787 = vpop.f32.mrf.mxu0
    %v788 = vadd.f32 0.0, %v787
    %v789 = vpop.f32.mrf.mxu0
    %v790 = vpop.f32.mrf.mxu0
    %v791 = vadd.f32 0.0, %v790
    %v792 = vpop.f32.mrf.mxu0
    %793 = vmatprep.mubr.bf16.mxu0 0
    %794 = vmatmul.mubr.bf16.gmra.mxu0 %v731
    %v795 = vpop.f32.mrf.mxu0
    %v796 = vadd.f32 0.0, %v795
    %v797 = vpop.f32.mrf.mxu0
    %v798 = vpop.f32.mrf.mxu0
    %v799 = vadd.f32 0.0, %v798
    %v800 = vpop.f32.mrf.mxu0
    %801 = vmatprep.mubr.bf16.mxu0 0
    %802 = vmatmul.mubr.bf16.gmra.mxu0 %v732
    %v803 = vpop.f32.mrf.mxu0
    %v804 = vadd.f32 0.0, %v803
    %v805 = vpop.f32.mrf.mxu0
    %v806 = vpop.f32.mrf.mxu0
    %v807 = vadd.f32 0.0, %v806
    %v808 = vpop.f32.mrf.mxu0
    %809 = vmatprep.mubr.bf16.mxu0 0
    %810 = vmatmul.mubr.bf16.gmra.mxu0 %v733
    %v811 = vpop.f32.mrf.mxu0
    %v812 = vadd.f32 0.0, %v811
    %v813 = vpop.f32.mrf.mxu0
    %v814 = vpop.f32.mrf.mxu0
    %v815 = vadd.f32 0.0, %v814
    %v816 = vpop.f32.mrf.mxu0
    %817 = vmatprep.mubr.bf16.mxu0 0
    %818 = vmatmul.mubr.bf16.gmra.mxu0 %v734
    %v819 = vpop.f32.mrf.mxu0
    %v820 = vadd.f32 0.0, %v819
    %v821 = vpop.f32.mrf.mxu0
    %v822 = vpop.f32.mrf.mxu0
    %v823 = vadd.f32 0.0, %v822
    %v824 = vpop.f32.mrf.mxu0
    %825 = vmatprep.mubr.bf16.mxu0 0
    %826 = vmatmul.mubr.bf16.gmra.mxu0 %v735
    %v827 = vpop.f32.mrf.mxu0
    %v828 = vadd.f32 0.0, %v827
    %v829 = vpop.f32.mrf.mxu0
    %v830 = vpop.f32.mrf.mxu0
    %v831 = vadd.f32 0.0, %v830
    %v832 = vpop.f32.mrf.mxu0
    %833 = vmatprep.mubr.bf16.mxu0 0
    %834 = vmatmul.mubr.bf16.gmra.mxu0 %v736
    %v835 = vpop.f32.mrf.mxu0
    %v836 = vadd.f32 0.0, %v835
    %v837 = vpop.f32.mrf.mxu0
    %v838 = vpop.f32.mrf.mxu0
    %v839 = vadd.f32 0.0, %v838
    %v840 = vpop.f32.mrf.mxu0
    %841 = vdwg.mxu0
    %v842 = vmul.f32 %v780, %v277
    %v843 = vmul.f32 %v783, %v277
    %v844 = vmul.f32 %v788, %v277
    %v845 = vmul.f32 %v791, %v277
    %v846 = vmul.f32 %v796, %v277
    %v847 = vmul.f32 %v799, %v277
    %v848 = vmul.f32 %v804, %v277
    %v849 = vmul.f32 %v807, %v277
    %v850 = vmul.f32 %v812, %v277
    %v851 = vmul.f32 %v815, %v277
    %v852 = vmul.f32 %v820, %v277
    %v853 = vmul.f32 %v823, %v277
    %v854 = vmul.f32 %v828, %v277
    %v855 = vmul.f32 %v831, %v277
    %v856 = vmul.f32 %v836, %v277
    %v857 = vmul.f32 %v839, %v277
    %v858 = vmax.f32 %v665, %v842
    %v859 = vmax.f32 %v666, %v843
    %v860 = vmax.f32 %v667, %v844
    %v861 = vmax.f32 %v668, %v845
    %v862 = vmax.f32 %v669, %v846
    %v863 = vmax.f32 %v670, %v847
    %v864 = vmax.f32 %v671, %v848
    %v865 = vmax.f32 %v672, %v849
    %v866 = vmax.f32 %v673, %v850
    %v867 = vmax.f32 %v674, %v851
    %v868 = vmax.f32 %v675, %v852
    %v869 = vmax.f32 %v676, %v853
    %v870 = vmax.f32 %v677, %v854
    %v871 = vmax.f32 %v678, %v855
    %v872 = vmax.f32 %v679, %v856
    %v873 = vmax.f32 %v680, %v857
    %v874 = vld [vmem:[%s3] sm:$0x1]
    %v876 = vlaneseq
    %v877 = vshrl.u32 %v876, 7
    %v878 = vsub.s32 0, %v877
    %v879 = vrot.slane %v874, %v878
    %v881 = vadd.f32 %v858, %v879
    %v882 = vadd.f32 %v859, %v879
    %v883 = vadd.f32 %v860, %v879
    %v884 = vadd.f32 %v861, %v879
    %v885 = vadd.f32 %v862, %v879
    %v886 = vadd.f32 %v863, %v879
    %v887 = vadd.f32 %v864, %v879
    %v888 = vadd.f32 %v865, %v879
    %v889 = vadd.f32 %v866, %v879
    %v890 = vadd.f32 %v867, %v879
    %v891 = vadd.f32 %v868, %v879
    %v892 = vadd.f32 %v869, %v879
    %v893 = vadd.f32 %v870, %v879
    %v894 = vadd.f32 %v871, %v879
    %v895 = vadd.f32 %v872, %v879
    %v896 = vadd.f32 %v873, %v879
    %v897 = vmax.f32 %v881, 0.0
    %v898 = vmax.f32 %v882, 0.0
    %v899 = vmax.f32 %v883, 0.0
    %v900 = vmax.f32 %v884, 0.0
    %v901 = vmax.f32 %v885, 0.0
    %v902 = vmax.f32 %v886, 0.0
    %v903 = vmax.f32 %v887, 0.0
    %v904 = vmax.f32 %v888, 0.0
    %v905 = vmax.f32 %v889, 0.0
    %v906 = vmax.f32 %v890, 0.0
    %v907 = vmax.f32 %v891, 0.0
    %v908 = vmax.f32 %v892, 0.0
    %v909 = vmax.f32 %v893, 0.0
    %v910 = vmax.f32 %v894, 0.0
    %v911 = vmax.f32 %v895, 0.0
    %v912 = vmax.f32 %v896, 0.0
    %913 = vst [vmem:[#allocation7] sm:$0xff] %v897
    %914 = vst [vmem:[#allocation7 + $0x8] sm:$0xff] %v898
    %915 = vst [vmem:[#allocation7 + $0x10] sm:$0xff] %v899
    %916 = vst [vmem:[#allocation7 + $0x18] sm:$0xff] %v900
    %917 = vst [vmem:[#allocation7 + $0x20] sm:$0xff] %v901
    %918 = vst [vmem:[#allocation7 + $0x28] sm:$0xff] %v902
    %919 = vst [vmem:[#allocation7 + $0x30] sm:$0xff] %v903
    %920 = vst [vmem:[#allocation7 + $0x38] sm:$0xff] %v904
    %921 = vst [vmem:[#allocation7 + $0x40] sm:$0xff] %v905
    %922 = vst [vmem:[#allocation7 + $0x48] sm:$0xff] %v906
    %923 = vst [vmem:[#allocation7 + $0x50] sm:$0xff] %v907
    %924 = vst [vmem:[#allocation7 + $0x58] sm:$0xff] %v908
    %925 = vst [vmem:[#allocation7 + $0x60] sm:$0xff] %v909
    %926 = vst [vmem:[#allocation7 + $0x68] sm:$0xff] %v910
    %927 = vst [vmem:[#allocation7 + $0x70] sm:$0xff] %v911
    %928 = vst [vmem:[#allocation7 + $0x78] sm:$0xff] %v912
    // Predicated region
    $region26: #{tpu_custom_call.1} parent=1 // pred_check
      _
    $region27: #{tpu_custom_call.1} parent=1 // pred_check_branch
      %930 = sbr.rel (0) target = $region29
    $region28: #{tpu_custom_call.1} parent=1 // pred_region
      %s932 = ssub.s32 2048, 2048
      %933 = vsyncadd [#allocation4], %s932
      %s934 = sshll.u32 [#allocation7], 4
      %s935 = int_to_ptr.vmem [resolvable:$true] %s934
      %940 = dma.vmem_to_hbm [thread:$0]  %s935, 2048, %s4, [#allocation4], 128, 128, 8
    $region29: #{tpu_custom_call.1} parent=1 // pred_fallthru
      _
    // Predicated region
    $region30: #{tpu_custom_call.1} parent=1 // pred_check
      _
    $region31: #{tpu_custom_call.1} parent=1 // pred_check_branch
      %942 = sbr.rel (0) target = $region33
    $region32: #{tpu_custom_call.1} parent=1 // pred_region
      %943 = dma.done [#allocation4], 2048
    $region33: #{tpu_custom_call.1} parent=1 // pred_fallthru
      _
    %944 = vsyncpa [#allocation3], 1
    %945 = vsyncpa [#allocation6], 1
    %946 = vsyncpa [#allocation4], 1

</llo_original>
